<compile_context>
chip_gen: v7x
topology: tpu7x:2x2x1
jax: 0.10.0
libtpu: 0.0.40
codegen_flags: <defaults>
</compile_context>

<pallas_src>
import functools

import jax
import jax.numpy as jnp
from jax.experimental import pallas as pl
from jax.experimental.pallas import tpu as pltpu

_EPS = 1e-5
_TARGET_IO_BYTES = 8 * 1024 * 1024   # per-block working-set target
_MAX_ROWS_PER_BLOCK = 4096
_VMEM_LIMIT_BYTES = 48 * 1024 * 1024  # fits v7x's 64 MiB with headroom


def _round_up(x, m):
  return (x + m - 1) // m * m


def _linear2_kernel(x_ref, mean_ref, std_ref, w1_ref, b1_ref, w2_ref, b2_ref,
                    o_ref):
  # One block = b_blk rows, each row = one (batch, channel) series of length L.
  x = x_ref[...].astype(jnp.float32)                    # (Rb, L)
  mean = mean_ref[...]                                  # (Rb, 1) per-batch mean
  std = std_ref[...]                                    # (Rb, 1) per-batch std

  # --- RevIN 'norm' (stats precomputed per batch, broadcast per row) ---
  inv_std = pl.reciprocal(std, approx=False)            # EUP
  xn = (x - mean) * inv_std                             # (Rb, L)

  cdt = w1_ref.dtype                                    # f32 or bf16 operands

  # --- Linear(seq_len -> hidden) + ReLU ---
  h = jnp.dot(xn.astype(cdt), w1_ref[...],
              preferred_element_type=jnp.float32)       # (Rb, H) f32 accum
  h = jnp.maximum(h + b1_ref[...], 0.0)

  # --- Dropout(p=0.2): identity in eval mode ---

  # --- LayerNorm(hidden): last-axis reductions, affine folded into W2/b2 ---
  mu = jnp.mean(h, axis=-1, keepdims=True)              # (Rb, 1)
  dh = h - mu
  var = jnp.mean(dh * dh, axis=-1, keepdims=True)       # biased variance
  hn = dh * jax.lax.rsqrt(var + _EPS)                   # (Rb, H)

  # --- Linear(hidden -> pred_len_padded), gamma/beta already folded in ---
  y = jnp.dot(hn.astype(cdt), w2_ref[...],
              preferred_element_type=jnp.float32)       # (Rb, P_pad)
  y = y + b2_ref[...]

  # --- RevIN 'denorm' ---
  o_ref[...] = (y * std + mean).astype(o_ref.dtype)     # lane-dense store


@functools.partial(jax.jit, static_argnames=("matmul_dtype",))
def linear2_forward(x, w1, b1, ln_gamma, ln_beta, w2, b2, *,
                    matmul_dtype=jnp.float32):
  """x: (B, C, L) float32 -> (B, C, P) float32."""
  B, C, L = x.shape
  H = w1.shape[1]
  P = w2.shape[1]

  xf = x.astype(jnp.float32)

  # ---- RevIN per-batch statistics (over all of (C, L)), f32 ----
  mean_b = jnp.mean(xf, axis=(1, 2))                                # (B,)
  var_b = jnp.mean(jnp.square(xf - mean_b[:, None, None]), axis=(1, 2))
  std_b = jnp.sqrt(var_b + _EPS)                                    # (B,)

  # ---- Weight preprocessing (tiny; no kron / no O(C^2) arrays) ----
  # Fold LayerNorm affine into the second linear:
  #   (hn*gamma + beta) @ W2 + b2 == hn @ (diag(gamma) @ W2) + (beta @ W2 + b2)
  w1f = w1.astype(jnp.float32)
  w2g = ln_gamma.astype(jnp.float32)[:, None] * w2.astype(jnp.float32)
  b2f = ln_beta.astype(jnp.float32) @ w2.astype(jnp.float32) + b2

  # Pad the output lane dim to a multiple of 128 (unmasked stores).
  P_pad = _round_up(P, 128)
  if P_pad != P:
    w2g = jnp.pad(w2g, ((0, 0), (0, P_pad - P)))
    b2f = jnp.pad(b2f, ((0, P_pad - P),))

  w1c = w1f.astype(matmul_dtype)                    # (L, H)   MXU operand
  w2c = w2g.astype(matmul_dtype)                    # (H, P_pad) MXU operand
  b1r = b1.astype(jnp.float32).reshape(1, H)        # f32 (added post-accum)
  b2r = b2f.astype(jnp.float32).reshape(1, P_pad)

  # ---- Row layout: one row per (batch, channel) series ----
  R = B * C
  x2 = xf.reshape(R, L)
  mean_r = jnp.broadcast_to(mean_b[:, None], (B, C)).reshape(R, 1)
  std_r = jnp.broadcast_to(std_b[:, None], (B, C)).reshape(R, 1)

  # ---- Row-block sizing (multiple of 8, big tiles, >=2 steps if possible) ----
  R8 = _round_up(R, 8)
  lane_in = _round_up(L, 128)
  lane_h = _round_up(H, 128)
  lane_out = P_pad
  bytes_per_row = 4 * (3 * lane_in + 3 * lane_out + 4 * lane_h)
  b_blk = max(8, min(_MAX_ROWS_PER_BLOCK,
                     (_TARGET_IO_BYTES // bytes_per_row) // 8 * 8))
  b_blk = min(b_blk, R8)
  if R8 >= 16:  # allow >= 2 grid steps (second TensorCore / DMA overlap)
    b_blk = min(b_blk, _round_up((R8 + 1) // 2, 8))
  n_blocks = pl.cdiv(R8, b_blk)
  R_final = n_blocks * b_blk

  pad = R_final - R
  if pad:
    x2 = jnp.pad(x2, ((0, pad), (0, 0)))
    mean_r = jnp.pad(mean_r, ((0, pad), (0, 0)))
    std_r = jnp.pad(std_r, ((0, pad), (0, 0)), constant_values=1.0)

  row_spec = pl.BlockSpec((b_blk, L), lambda r: (r, 0))
  stat_spec = pl.BlockSpec((b_blk, 1), lambda r: (r, 0))
  # Grid-invariant operands: single-buffered, fetched once.
  w1_spec = pl.BlockSpec((L, H), lambda r: (0, 0), pipeline_mode=pl.Buffered(1))
  b1_spec = pl.BlockSpec((1, H), lambda r: (0, 0), pipeline_mode=pl.Buffered(1))
  w2_spec = pl.BlockSpec((H, P_pad), lambda r: (0, 0),
                         pipeline_mode=pl.Buffered(1))
  b2_spec = pl.BlockSpec((1, P_pad), lambda r: (0, 0),
                         pipeline_mode=pl.Buffered(1))

  out2 = pl.pallas_call(
      _linear2_kernel,
      out_shape=jax.ShapeDtypeStruct((R_final, P_pad), x.dtype),
      grid=(n_blocks,),
      in_specs=[row_spec, stat_spec, stat_spec,
                w1_spec, b1_spec, w2_spec, b2_spec],
      out_specs=pl.BlockSpec((b_blk, P_pad), lambda r: (r, 0)),
      compiler_params=pltpu.CompilerParams(
          dimension_semantics=("parallel",),
          vmem_limit_bytes=_VMEM_LIMIT_BYTES),
  )(x2, mean_r, std_r, w1c, b1r, w2c, b2r)

  return out2[:R, :P].reshape(B, C, P)


def _reference(x, w1, b1, ln_gamma, ln_beta, w2, b2):
  """Pure-JAX reference matching the PyTorch forward (eval mode)."""
  mean = jnp.mean(x, axis=(1, 2), keepdims=True)
  stdev = jnp.sqrt(jnp.var(x, axis=(1, 2), keepdims=True) + _EPS)
  xn = (x - mean) / stdev
  h = jnp.maximum(xn @ w1 + b1, 0.0)
  mu = jnp.mean(h, axis=-1, keepdims=True)
  v = jnp.var(h, axis=-1, keepdims=True)
  hn = (h - mu) / jnp.sqrt(v + _EPS) * ln_gamma + ln_beta
  y = hn @ w2 + b2
  return y * stdev + mean


if __name__ == "__main__":
  # Small shapes consistent with the module:
  B, ENC_IN, SEQ_LEN, HIDDEN, PRED_LEN = 2, 4, 8, 32, 12

  key = jax.random.PRNGKey(0)
  kx, kw1, kb1, kg, kbe, kw2, kb2 = jax.random.split(key, 7)

  x = jax.random.normal(kx, (B, ENC_IN, SEQ_LEN), dtype=jnp.float32)
  # Deterministic synthetic parameters (shapes from the module's __init__).
  w1 = jax.random.normal(kw1, (SEQ_LEN, HIDDEN), dtype=jnp.float32) * 0.1
  b1 = jax.random.normal(kb1, (HIDDEN,), dtype=jnp.float32) * 0.1
  ln_gamma = 1.0 + 0.1 * jax.random.normal(kg, (HIDDEN,), dtype=jnp.float32)
  ln_beta = 0.1 * jax.random.normal(kbe, (HIDDEN,), dtype=jnp.float32)
  w2 = jax.random.normal(kw2, (HIDDEN, PRED_LEN), dtype=jnp.float32) * 0.1
  b2 = jax.random.normal(kb2, (PRED_LEN,), dtype=jnp.float32) * 0.1

  ref = _reference(x, w1, b1, ln_gamma, ln_beta, w2, b2)

  # f32 MXU operands (bit-faithful path).
  out = linear2_forward(x, w1, b1, ln_gamma, ln_beta, w2, b2)
  out = jax.block_until_ready(out)
  assert out.shape == (B, ENC_IN, PRED_LEN), out.shape
  assert jnp.allclose(out, ref, atol=1e-4, rtol=1e-4), (
      float(jnp.max(jnp.abs(out - ref))))

  # bf16 MXU operands (v6e/v7x fast path); stats stay f32, looser tolerance.
  out_bf16 = linear2_forward(x, w1, b1, ln_gamma, ln_beta, w2, b2,
                             matmul_dtype=jnp.bfloat16)
  out_bf16 = jax.block_until_ready(out_bf16)
  assert out_bf16.shape == (B, ENC_IN, PRED_LEN), out_bf16.shape
  assert float(jnp.max(jnp.abs(out_bf16 - ref))) < 1e-1

  print("KERNEL_OK")
</pallas_src>

<mosaic_0001>
module attributes {stable_mosaic.version = 11 : i64} {
  func.func @_linear2_kernel(%arg0: i32, %arg1: memref<8x8xf32, #tpu.memory_space<vmem>>, %arg2: memref<8x1xf32, #tpu.memory_space<vmem>>, %arg3: memref<8x1xf32, #tpu.memory_space<vmem>>, %arg4: memref<8x32xf32, #tpu.memory_space<vmem>>, %arg5: memref<1x32xf32, #tpu.memory_space<vmem>>, %arg6: memref<32x128xf32, #tpu.memory_space<vmem>>, %arg7: memref<1x128xf32, #tpu.memory_space<vmem>>, %arg8: memref<8x128xf32, #tpu.memory_space<vmem>>) attributes {dimension_semantics = [#tpu.dimension_semantics<parallel>], iteration_bounds = array<i64: 1>, scalar_prefetch = 0 : i64, scratch_operands = 0 : i64, tpu.core_type = #tpu.core_type<tc>, window_params = [{transform_indices = @transform_0, window_bounds = array<i64: 8, 8>}, {transform_indices = @transform_1, window_bounds = array<i64: 8, 1>}, {transform_indices = @transform_2, window_bounds = array<i64: 8, 1>}, {pipeline_mode = #tpu.pipeline_mode<synchronous>, transform_indices = @transform_3, window_bounds = array<i64: 8, 32>}, {pipeline_mode = #tpu.pipeline_mode<synchronous>, transform_indices = @transform_4, window_bounds = array<i64: 1, 32>}, {pipeline_mode = #tpu.pipeline_mode<synchronous>, transform_indices = @transform_5, window_bounds = array<i64: 32, 128>}, {pipeline_mode = #tpu.pipeline_mode<synchronous>, transform_indices = @transform_6, window_bounds = array<i64: 1, 128>}, {transform_indices = @transform_7, window_bounds = array<i64: 8, 128>}]} {
    %c0 = arith.constant 0 : index
    %c0_0 = arith.constant 0 : index
    %0 = vector.load %arg1[%c0, %c0_0] : memref<8x8xf32, #tpu.memory_space<vmem>>, vector<8x8xf32>
    %c0_1 = arith.constant 0 : index
    %c0_2 = arith.constant 0 : index
    %1 = vector.load %arg2[%c0_1, %c0_2] : memref<8x1xf32, #tpu.memory_space<vmem>>, vector<8x1xf32>
    %c0_3 = arith.constant 0 : index
    %c0_4 = arith.constant 0 : index
    %2 = vector.load %arg3[%c0_3, %c0_4] : memref<8x1xf32, #tpu.memory_space<vmem>>, vector<8x1xf32>
    %3 = tpu.reciprocal %2 : vector<8x1xf32> -> vector<8x1xf32>
    %4 = vector.broadcast %1 : vector<8x1xf32> to vector<8x8xf32>
    %5 = arith.subf %0, %4 : vector<8x8xf32>
    %6 = vector.broadcast %3 : vector<8x1xf32> to vector<8x8xf32>
    %7 = arith.mulf %5, %6 : vector<8x8xf32>
    %c0_5 = arith.constant 0 : index
    %c0_6 = arith.constant 0 : index
    %8 = vector.load %arg4[%c0_5, %c0_6] : memref<8x32xf32, #tpu.memory_space<vmem>>, vector<8x32xf32>
    %cst = arith.constant dense<0.000000e+00> : vector<8x32xf32>
    %9 = tpu.matmul %7, %8, %cst {dimension_numbers = #tpu.dot_dimension_numbers<[1], [0], [0], [1], [0, 0, 1, 1], [], []>} : vector<8x8xf32>, vector<8x32xf32>, vector<8x32xf32> -> vector<8x32xf32>
    %c0_7 = arith.constant 0 : index
    %c0_8 = arith.constant 0 : index
    %10 = vector.load %arg5[%c0_7, %c0_8] : memref<1x32xf32, #tpu.memory_space<vmem>>, vector<1x32xf32>
    %11 = vector.broadcast %10 : vector<1x32xf32> to vector<8x32xf32>
    %12 = arith.addf %9, %11 : vector<8x32xf32>
    %cst_9 = arith.constant 0.000000e+00 : f32
    %13 = vector.broadcast %cst_9 : f32 to vector<8x32xf32>
    %14 = arith.maximumf %12, %13 : vector<8x32xf32>
    %cst_10 = arith.constant dense<0.000000e+00> : vector<8xf32>
    %15 = vector.multi_reduction <add>, %14, %cst_10 [1] : vector<8x32xf32> to vector<8xf32>
    %16 = vector.shape_cast %15 : vector<8xf32> to vector<8x1xf32>
    %cst_11 = arith.constant 3.200000e+01 : f32
    %17 = vector.broadcast %cst_11 : f32 to vector<8x1xf32>
    %18 = arith.divf %16, %17 : vector<8x1xf32>
    %19 = vector.broadcast %18 : vector<8x1xf32> to vector<8x32xf32>
    %20 = arith.subf %14, %19 : vector<8x32xf32>
    %21 = arith.mulf %20, %20 : vector<8x32xf32>
    %cst_12 = arith.constant dense<0.000000e+00> : vector<8xf32>
    %22 = vector.multi_reduction <add>, %21, %cst_12 [1] : vector<8x32xf32> to vector<8xf32>
    %23 = vector.shape_cast %22 : vector<8xf32> to vector<8x1xf32>
    %cst_13 = arith.constant 3.200000e+01 : f32
    %24 = vector.broadcast %cst_13 : f32 to vector<8x1xf32>
    %25 = arith.divf %23, %24 : vector<8x1xf32>
    %cst_14 = arith.constant 9.99999974E-6 : f32
    %26 = vector.broadcast %cst_14 : f32 to vector<8x1xf32>
    %27 = arith.addf %25, %26 : vector<8x1xf32>
    %28 = math.rsqrt %27 : vector<8x1xf32>
    %29 = vector.broadcast %28 : vector<8x1xf32> to vector<8x32xf32>
    %30 = arith.mulf %20, %29 : vector<8x32xf32>
    %c0_15 = arith.constant 0 : index
    %c0_16 = arith.constant 0 : index
    %31 = vector.load %arg6[%c0_15, %c0_16] : memref<32x128xf32, #tpu.memory_space<vmem>>, vector<32x128xf32>
    %cst_17 = arith.constant dense<0.000000e+00> : vector<8x128xf32>
    %32 = tpu.matmul %30, %31, %cst_17 {dimension_numbers = #tpu.dot_dimension_numbers<[1], [0], [0], [1], [0, 0, 1, 1], [], []>} : vector<8x32xf32>, vector<32x128xf32>, vector<8x128xf32> -> vector<8x128xf32>
    %c0_18 = arith.constant 0 : index
    %c0_19 = arith.constant 0 : index
    %33 = vector.load %arg7[%c0_18, %c0_19] : memref<1x128xf32, #tpu.memory_space<vmem>>, vector<1x128xf32>
    %34 = vector.broadcast %33 : vector<1x128xf32> to vector<8x128xf32>
    %35 = arith.addf %32, %34 : vector<8x128xf32>
    %36 = vector.broadcast %2 : vector<8x1xf32> to vector<8x128xf32>
    %37 = arith.mulf %35, %36 : vector<8x128xf32>
    %38 = vector.broadcast %1 : vector<8x1xf32> to vector<8x128xf32>
    %39 = arith.addf %37, %38 : vector<8x128xf32>
    %c0_20 = arith.constant 0 : index
    %c0_21 = arith.constant 0 : index
    %40 = vector.load %arg8[%c0_20, %c0_21] : memref<8x128xf32, #tpu.memory_space<vmem>>, vector<8x128xf32>
    tpu.vector_store %arg8[%c0_20, %c0_21], %39 {strides = array<i32>} : memref<8x128xf32, #tpu.memory_space<vmem>>, vector<8x128xf32>,
    return
  }
  func.func @transform_0(%arg0: i32) -> (i32, i32) {
    %c0_i32 = arith.constant 0 : i32
    %c0_i32_0 = arith.constant 0 : i32
    return %arg0, %c0_i32 : i32, i32
  }
  func.func @transform_1(%arg0: i32) -> (i32, i32) {
    %c0_i32 = arith.constant 0 : i32
    %c0_i32_0 = arith.constant 0 : i32
    return %arg0, %c0_i32 : i32, i32
  }
  func.func @transform_2(%arg0: i32) -> (i32, i32) {
    %c0_i32 = arith.constant 0 : i32
    %c0_i32_0 = arith.constant 0 : i32
    return %arg0, %c0_i32 : i32, i32
  }
  func.func @transform_3(%arg0: i32) -> (i32, i32) {
    %c0_i32 = arith.constant 0 : i32
    %c0_i32_0 = arith.constant 0 : i32
    %c0_i32_1 = arith.constant 0 : i32
    return %c0_i32, %c0_i32_0 : i32, i32
  }
  func.func @transform_4(%arg0: i32) -> (i32, i32) {
    %c0_i32 = arith.constant 0 : i32
    %c0_i32_0 = arith.constant 0 : i32
    %c0_i32_1 = arith.constant 0 : i32
    return %c0_i32, %c0_i32_0 : i32, i32
  }
  func.func @transform_5(%arg0: i32) -> (i32, i32) {
    %c0_i32 = arith.constant 0 : i32
    %c0_i32_0 = arith.constant 0 : i32
    %c0_i32_1 = arith.constant 0 : i32
    return %c0_i32, %c0_i32_0 : i32, i32
  }
  func.func @transform_6(%arg0: i32) -> (i32, i32) {
    %c0_i32 = arith.constant 0 : i32
    %c0_i32_0 = arith.constant 0 : i32
    %c0_i32_1 = arith.constant 0 : i32
    return %c0_i32, %c0_i32_0 : i32, i32
  }
  func.func @transform_7(%arg0: i32) -> (i32, i32) {
    %c0_i32 = arith.constant 0 : i32
    %c0_i32_0 = arith.constant 0 : i32
    return %arg0, %c0_i32 : i32, i32
  }
}

</mosaic_0001>

<llo_original>
// kernel: linear2_forward.1
$region0: #{linear2_forward.1}
  #allocation0 [shape = 'u32[]', space=smem, size = 0x4, offset = 0x4, fixed_abs, tag = 'smem constant byte address 0x4 - core index']
  #allocation1 [shape = 'u32[144,128]{1,0:T(1,128)}', space=vmem, size = 0x12000, scoped, tag = 'internal scratch']
  %s0 = inlined_call_operand.vmem [shape: f32[8,8], index: 0, kind: input, shape index: {}]
  %s1 = inlined_call_operand.vmem [shape: f32[8,1], index: 1, kind: input, shape index: {}]
  %s2 = inlined_call_operand.vmem [shape: f32[8,1], index: 2, kind: input, shape index: {}]
  %s3 = inlined_call_operand.vmem [shape: f32[8,32], index: 3, kind: input, shape index: {}]
  %s4 = inlined_call_operand.vmem [shape: f32[1,32], index: 4, kind: input, shape index: {}]
  %s5 = inlined_call_operand.vmem [shape: f32[32,128], index: 5, kind: input, shape index: {}]
  %s6 = inlined_call_operand.vmem [shape: f32[1,128], index: 6, kind: input, shape index: {}]
  %s7 = inlined_call_operand.hbm [shape: f32[8,128], index: 7, kind: output, shape index: {}]
  %s8 = sld [smem:[#allocation0]]
  $region38: #{linear2_forward.1} parent=0
    _
  %s10 = ssub.s32 1, %s8
  %s11 = scalar_select 0, %s10, %s8
  $region1: #{linear2_forward.1} parent=0
    #allocation2 [shape = 'u8[4096]{0}', space=vmem, size = 0x1000, scoped, tag = 'output window, operand 0, single buffered']
    #allocation3 [shape = 's32[1]{0}', space=sflag, size = 0x4, scoped, tag = 'scoped memory for linear2_forward.1']
    %12 = vsyncpa [#allocation3], 0
    // Predicated region
    $region2: #{linear2_forward.1} parent=1 // pred_check
      _
    $region3: #{linear2_forward.1} parent=1 // pred_check_branch
      %14 = sbr.rel (0) target = $region5
    $region4: #{linear2_forward.1} parent=1 // pred_region
      _
    $region5: #{linear2_forward.1} parent=1 // pred_fallthru
      _
    // Predicated region
    $region6: #{linear2_forward.1} parent=1 // pred_check
      _
    $region7: #{linear2_forward.1} parent=1 // pred_check_branch
      %16 = sbr.rel (0) target = $region9
    $region8: #{linear2_forward.1} parent=1 // pred_region
      _
    $region9: #{linear2_forward.1} parent=1 // pred_fallthru
      _
    // Predicated region
    $region10: #{linear2_forward.1} parent=1 // pred_check
      _
    $region11: #{linear2_forward.1} parent=1 // pred_check_branch
      %18 = sbr.rel (0) target = $region13
    $region12: #{linear2_forward.1} parent=1 // pred_region
      _
    $region13: #{linear2_forward.1} parent=1 // pred_fallthru
      _
    // Predicated region
    $region14: #{linear2_forward.1} parent=1 // pred_check
      _
    $region15: #{linear2_forward.1} parent=1 // pred_check_branch
      %20 = sbr.rel (0) target = $region17
    $region16: #{linear2_forward.1} parent=1 // pred_region
      _
    $region17: #{linear2_forward.1} parent=1 // pred_fallthru
      _
    // Predicated region
    $region18: #{linear2_forward.1} parent=1 // pred_check
      _
    $region19: #{linear2_forward.1} parent=1 // pred_check_branch
      %22 = sbr.rel (0) target = $region21
    $region20: #{linear2_forward.1} parent=1 // pred_region
      _
    $region21: #{linear2_forward.1} parent=1 // pred_fallthru
      _
    // Predicated region
    $region22: #{linear2_forward.1} parent=1 // pred_check
      _
    $region23: #{linear2_forward.1} parent=1 // pred_check_branch
      %24 = sbr.rel (0) target = $region25
    $region24: #{linear2_forward.1} parent=1 // pred_region
      _
    $region25: #{linear2_forward.1} parent=1 // pred_fallthru
      _
    // Predicated region
    $region26: #{linear2_forward.1} parent=1 // pred_check
      _
    $region27: #{linear2_forward.1} parent=1 // pred_check_branch
      %26 = sbr.rel (0) target = $region29
    $region28: #{linear2_forward.1} parent=1 // pred_region
      _
    $region29: #{linear2_forward.1} parent=1 // pred_fallthru
      _
    %v27 = vld [vmem:[%s0] sm:$0xff]
    %v28 = vld [vmem:[%s1] sm:$0xff]
    %v29 = vld [vmem:[%s2] sm:$0xff]
    %v30 = vrcp.pop %v29
    %32 = vset.pattern.permute.xlu0 0
    %33 = vperm.xlu0 %32, %v28
    %v34 = vpop.permute.xlu0 %33
    %v36 = vsub.f32 %v27, %v34
    %38 = vset.pattern.permute.xlu0 0
    %39 = vperm.xlu0 %38, %v30
    %v40 = vpop.permute.xlu0 %39
    %v42 = vmul.f32 %v36, %v40
    %v43 = vld [vmem:[%s3] sm:$0xff]
    %v44 = vld [vmem:[%s4] sm:$0x1]
    %v46 = vlaneseq
    %v47 = vshrl.u32 %v46, 7
    %v48 = vsub.s32 0, %v47
    %v49 = vrot.slane %v44, %v48
    %vm51 = vcmask 64512
    %v53 = vsel %vm51, %v42, 0
    %55 = vmatprep.subr.mxu0 0.0
    %56 = vmatpush1.msra.mxu0 %v43
    %57 = vmatprep.subr.mxu0 0.0
    %58 = vmatpush1.msra.mxu0 0.0
    %59 = vmatprep.subr.mxu0 0.0
    %60 = vmatpush1.msra.mxu0 0.0
    %61 = vmatprep.subr.mxu0 0.0
    %62 = vmatpush1.msra.mxu0 0.0
    %63 = vmatprep.subr.mxu0 0.0
    %64 = vmatpush1.msra.mxu0 0.0
    %65 = vmatprep.subr.mxu0 0.0
    %66 = vmatpush1.msra.mxu0 0.0
    %67 = vmatprep.subr.mxu0 0.0
    %68 = vmatpush1.msra.mxu0 0.0
    %69 = vmatprep.subr.mxu0 0.0
    %70 = vmatpush1.msra.mxu0 0.0
    %71 = vmatprep.subr.mxu0 0.0
    %72 = vmatpush1.msra.mxu0 0.0
    %73 = vmatprep.subr.mxu0 0.0
    %74 = vmatpush1.msra.mxu0 0.0
    %75 = vmatprep.subr.mxu0 0.0
    %76 = vmatpush1.msra.mxu0 0.0
    %77 = vmatprep.subr.mxu0 0.0
    %78 = vmatpush1.msra.mxu0 0.0
    %79 = vmatprep.subr.mxu0 0.0
    %80 = vmatpush1.msra.mxu0 0.0
    %81 = vmatprep.subr.mxu0 0.0
    %82 = vmatpush1.msra.mxu0 0.0
    %83 = vmatprep.subr.mxu0 0.0
    %84 = vmatpush1.msra.mxu0 0.0
    %85 = vmatprep.subr.mxu0 0.0
    %86 = vmatpush1.msra.mxu0 0.0
    %87 = vmatprep.subr.mxu0 0.0
    %88 = vmatpush1.msra.mxu0 0.0
    %89 = vmatprep.subr.mxu0 0.0
    %90 = vmatpush1.msra.mxu0 0.0
    %91 = vmatprep.subr.mxu0 0.0
    %92 = vmatpush1.msra.mxu0 0.0
    %93 = vmatprep.subr.mxu0 0.0
    %94 = vmatpush1.msra.mxu0 0.0
    %95 = vmatprep.subr.mxu0 0.0
    %96 = vmatpush1.msra.mxu0 0.0
    %97 = vmatprep.subr.mxu0 0.0
    %98 = vmatpush1.msra.mxu0 0.0
    %99 = vmatprep.subr.mxu0 0.0
    %100 = vmatpush1.msra.mxu0 0.0
    %101 = vmatprep.subr.mxu0 0.0
    %102 = vmatpush1.msra.mxu0 0.0
    %103 = vmatprep.subr.mxu0 0.0
    %104 = vmatpush1.msra.mxu0 0.0
    %105 = vmatprep.subr.mxu0 0.0
    %106 = vmatpush1.msra.mxu0 0.0
    %107 = vmatprep.subr.mxu0 0.0
    %108 = vmatpush1.msra.mxu0 0.0
    %109 = vmatprep.subr.mxu0 0.0
    %110 = vmatpush1.msra.mxu0 0.0
    %111 = vmatprep.subr.mxu0 0.0
    %112 = vmatpush1.msra.mxu0 0.0
    %113 = vmatprep.subr.mxu0 0.0
    %114 = vmatpush1.msra.mxu0 0.0
    %115 = vmatprep.subr.mxu0 0.0
    %116 = vmatpush1.msra.mxu0 0.0
    %117 = vmatprep.subr.mxu0 0.0
    %118 = vmatpush1.msra.mxu0 0.0
    %119 = vmatprep.mubr.f32.mxu0 0.0
    %120 = vmatmul.mubr.f32.gmra.mrb[0].mxu0 %v53
    %v121 = vpop.f32.mrb[0].mxu0
    %v122 = vadd.f32 %v49, %v121
    %v123 = vpop.f32.mrb[0].mxu0
    %124 = vdwg.mxu0
    %v125 = vmax.f32 %v122, 0.0
    %vm126 = vcmask 261120
    %v127 = vsel %vm126, %v125, 0.0
    %128 = vadd.xlane.f32.xlu0 %v127
    %v129 = vpop.xlane.xlu0 %128
    %v130 = vrcp.pop 32.0
    %v131 = vmul.f32 %v129, %v130
    %v132 = vsub.f32 %v125, %v131
    %v133 = vmul.f32 %v132, %v132
    %v134 = vsel %vm126, %v133, 0.0
    %135 = vadd.xlane.f32.xlu0 %v134
    %v136 = vpop.xlane.xlu0 %135
    %v137 = vmul.f32 %v136, %v130
    %v138 = vadd.f32 %v137, 1e-05
    %v139 = vrsqrt.pop %v138
    %v140 = vmul.f32 %v132, %v139
    %v141 = vld [vmem:[%s5] sm:$0xff]
    %v142 = vld [vmem:[%s5 + $0x8] sm:$0xff]
    %v143 = vld [vmem:[%s5 + $0x10] sm:$0xff]
    %v144 = vld [vmem:[%s5 + $0x18] sm:$0xff]
    %v145 = vld [vmem:[%s6] sm:$0x1]
    %v147 = vlaneseq
    %v148 = vshrl.u32 %v147, 7
    %v149 = vsub.s32 0, %v148
    %v150 = vrot.slane %v145, %v149
    %v153 = vsel %vm126, %v140, 0
    %155 = vmatprep.subr.mxu0 0.0
    %156 = vmatpush1.msra.mxu0 %v141
    %157 = vmatprep.subr.mxu0 0.0
    %158 = vmatpush1.msra.mxu0 %v142
    %159 = vmatprep.subr.mxu0 0.0
    %160 = vmatpush1.msra.mxu0 %v143
    %161 = vmatprep.subr.mxu0 0.0
    %162 = vmatpush1.msra.mxu0 %v144
    %163 = vmatprep.subr.mxu0 0.0
    %164 = vmatpush1.msra.mxu0 0.0
    %165 = vmatprep.subr.mxu0 0.0
    %166 = vmatpush1.msra.mxu0 0.0
    %167 = vmatprep.subr.mxu0 0.0
    %168 = vmatpush1.msra.mxu0 0.0
    %169 = vmatprep.subr.mxu0 0.0
    %170 = vmatpush1.msra.mxu0 0.0
    %171 = vmatprep.subr.mxu0 0.0
    %172 = vmatpush1.msra.mxu0 0.0
    %173 = vmatprep.subr.mxu0 0.0
    %174 = vmatpush1.msra.mxu0 0.0
    %175 = vmatprep.subr.mxu0 0.0
    %176 = vmatpush1.msra.mxu0 0.0
    %177 = vmatprep.subr.mxu0 0.0
    %178 = vmatpush1.msra.mxu0 0.0
    %179 = vmatprep.subr.mxu0 0.0
    %180 = vmatpush1.msra.mxu0 0.0
    %181 = vmatprep.subr.mxu0 0.0
    %182 = vmatpush1.msra.mxu0 0.0
    %183 = vmatprep.subr.mxu0 0.0
    %184 = vmatpush1.msra.mxu0 0.0
    %185 = vmatprep.subr.mxu0 0.0
    %186 = vmatpush1.msra.mxu0 0.0
    %187 = vmatprep.subr.mxu0 0.0
    %188 = vmatpush1.msra.mxu0 0.0
    %189 = vmatprep.subr.mxu0 0.0
    %190 = vmatpush1.msra.mxu0 0.0
    %191 = vmatprep.subr.mxu0 0.0
    %192 = vmatpush1.msra.mxu0 0.0
    %193 = vmatprep.subr.mxu0 0.0
    %194 = vmatpush1.msra.mxu0 0.0
    %195 = vmatprep.subr.mxu0 0.0
    %196 = vmatpush1.msra.mxu0 0.0
    %197 = vmatprep.subr.mxu0 0.0
    %198 = vmatpush1.msra.mxu0 0.0
    %199 = vmatprep.subr.mxu0 0.0
    %200 = vmatpush1.msra.mxu0 0.0
    %201 = vmatprep.subr.mxu0 0.0
    %202 = vmatpush1.msra.mxu0 0.0
    %203 = vmatprep.subr.mxu0 0.0
    %204 = vmatpush1.msra.mxu0 0.0
    %205 = vmatprep.subr.mxu0 0.0
    %206 = vmatpush1.msra.mxu0 0.0
    %207 = vmatprep.subr.mxu0 0.0
    %208 = vmatpush1.msra.mxu0 0.0
    %209 = vmatprep.subr.mxu0 0.0
    %210 = vmatpush1.msra.mxu0 0.0
    %211 = vmatprep.subr.mxu0 0.0
    %212 = vmatpush1.msra.mxu0 0.0
    %213 = vmatprep.subr.mxu0 0.0
    %214 = vmatpush1.msra.mxu0 0.0
    %215 = vmatprep.subr.mxu0 0.0
    %216 = vmatpush1.msra.mxu0 0.0
    %217 = vmatprep.subr.mxu0 0.0
    %218 = vmatpush1.msra.mxu0 0.0
    %219 = vmatprep.mubr.f32.mxu0 0.0
    %220 = vmatmul.mubr.f32.gmra.mrb[0].mxu0 %v153
    %v221 = vpop.f32.mrb[0].mxu0
    %v222 = vadd.f32 %v150, %v221
    %v223 = vpop.f32.mrb[0].mxu0
    %224 = vdwg.mxu0
    %226 = vset.pattern.permute.xlu0 0
    %227 = vperm.xlu0 %226, %v29
    %v228 = vpop.permute.xlu0 %227
    %v230 = vmul.f32 %v222, %v228
    %v231 = vadd.f32 %v230, %v34
    %232 = vst [vmem:[#allocation2] sm:$0xff] %v231
    // Predicated region
    $region30: #{linear2_forward.1} parent=1 // pred_check
      _
    $region31: #{linear2_forward.1} parent=1 // pred_check_branch
      %234 = sbr.rel (0) target = $region33
    $region32: #{linear2_forward.1} parent=1 // pred_region
      %s236 = ssub.s32 128, 128
      %237 = vsyncadd [#allocation3], %s236
      %s239 = sshll.u32 [#allocation2], 4
      %s240 = int_to_ptr.vmem [resolvable:$true] %s239
      %242 = dma.vmem_to_hbm [thread:$0]  %s240, 128, %s7, [#allocation3]
    $region33: #{linear2_forward.1} parent=1 // pred_fallthru
      _
    // Predicated region
    $region34: #{linear2_forward.1} parent=1 // pred_check
      _
    $region35: #{linear2_forward.1} parent=1 // pred_check_branch
      %244 = sbr.rel (0) target = $region37
    $region36: #{linear2_forward.1} parent=1 // pred_region
      %245 = dma.done [#allocation3], 128
    $region37: #{linear2_forward.1} parent=1 // pred_fallthru
      _
    %246 = vsyncpa [#allocation3], 1

</llo_original>
